<compile_context>
chip_gen: v7x
topology: tpu7x:2x2x1
jax: 0.10.0
libtpu: 0.0.40
codegen_flags: <defaults>
</compile_context>

<pallas_src>
import functools

import jax
import jax.numpy as jnp
from jax.experimental import pallas as pl
from jax.experimental.pallas import tpu as pltpu


# ------------------------------ helpers ------------------------------

def _pick_tile(n, target, aligns=(128, 8)):
    """Largest divisor of `n` that is <= target and a multiple of one of
    `aligns` (tried in order).  Falls back to the full dimension, which is
    always a legal BlockSpec block size."""
    if n <= target:
        return n
    for align in aligns:
        t = (target // align) * align
        while t >= align:
            if n % t == 0:
                return t
            t -= align
    return n


# ------------------------- tiled matmul kernel -------------------------

def _matmul_kernel(a_ref, b_ref, o_ref, acc_ref):
    @pl.when(pl.program_id(2) == 0)
    def _init():
        acc_ref[...] = jnp.zeros(acc_ref.shape, acc_ref.dtype)

    acc_ref[...] += jnp.dot(a_ref[...], b_ref[...],
                            preferred_element_type=jnp.float32)

    @pl.when(pl.program_id(2) == pl.num_programs(2) - 1)
    def _store():
        o_ref[...] = acc_ref[...].astype(o_ref.dtype)


def pallas_matmul(a, b, *, tm=512, tn=512, tk=512):
    """(M,K) @ (K,N) -> (M,N), tiled + pipelined, f32 accumulation."""
    M, K = a.shape
    K2, N = b.shape
    assert K == K2
    tm = _pick_tile(M, tm, aligns=(128, 8))   # sublane dim of a / out
    tn = _pick_tile(N, tn, aligns=(128,))     # lane dim of b / out
    tk = _pick_tile(K, tk, aligns=(128,))     # lane of a / sublane of b
    grid = (M // tm, N // tn, K // tk)

    itemsize = jnp.dtype(a.dtype).itemsize
    # double-buffered input/output blocks + f32 accumulator, with headroom;
    # capped at 56 MiB so the same config still pipelines on v7x (64 MiB VMEM).
    vmem_bytes = 2 * (tm * tk + tk * tn + tm * tn) * itemsize + tm * tn * 4
    vmem_limit = min(max(vmem_bytes + (8 << 20), 32 << 20), 56 << 20)

    return pl.pallas_call(
        _matmul_kernel,
        out_shape=jax.ShapeDtypeStruct((M, N), a.dtype),
        grid=grid,
        in_specs=[pl.BlockSpec((tm, tk), lambda i, j, k: (i, k)),
                  pl.BlockSpec((tk, tn), lambda i, j, k: (k, j))],
        out_specs=pl.BlockSpec((tm, tn), lambda i, j, k: (i, j)),
        scratch_shapes=[pltpu.VMEM((tm, tn), jnp.float32)],
        compiler_params=pltpu.CompilerParams(
            dimension_semantics=("parallel", "parallel", "arbitrary"),
            vmem_limit_bytes=vmem_limit),
    )(a, b)


# ------------------- q/k/v prep kernel (norm + rope + lambda mix) -------------------
# Runs once per (batch, head, token-block): rms_norm + rotary for q and k,
# and v_mix = lam0*v (+ lam1*ve).  Keeps this work (and the ve / rope-table
# DMA) out of the O(T^2) attention inner loop.

def _qkv_prep_kernel(lam_ref, q_in, k_in, v_in, *args, eps, half, has_ve):
    if has_ve:
        ve_in, cos_ref, sin_ref, q_out, k_out, v_out = args
    else:
        ve_in = None
        cos_ref, sin_ref, q_out, k_out, v_out = args

    cos = cos_ref[...]
    sin = sin_ref[...]

    def rms_rope(x):
        xf = x.astype(jnp.float32)
        xn = xf * jax.lax.rsqrt(jnp.mean(xf * xf, axis=-1, keepdims=True) + eps)
        x1 = xn[:, :half]
        x2 = xn[:, half:]
        return jnp.concatenate([x1 * cos + x2 * sin,
                                x2 * cos - x1 * sin], axis=-1)

    q_out[0] = rms_rope(q_in[0]).astype(q_out.dtype)
    k_out[0] = rms_rope(k_in[0]).astype(k_out.dtype)

    vf = lam_ref[0] * v_in[0].astype(jnp.float32)
    if has_ve:
        vf = vf + lam_ref[1] * ve_in[0].astype(jnp.float32)
    v_out[0] = vf.astype(v_out.dtype)


def pallas_qkv_prep(qkv, ve, lambdas, cos, sin, num_heads, head_dim,
                    *, t_blk_target=256):
    """qkv: (B,T,3*H*D); ve: (B,T,H*D) or None -> (q_hat, k_hat, v_mix)."""
    B, T, _ = qkv.shape
    H, D = num_heads, head_dim
    hdim = H * D
    t_blk = _pick_tile(T, t_blk_target)
    nT = T // t_blk
    has_ve = ve is not None

    kern = functools.partial(_qkv_prep_kernel,
                             eps=float(jnp.finfo(jnp.float32).eps),
                             half=D // 2, has_ve=has_ve)

    in_specs = [
        pl.BlockSpec(memory_space=pltpu.MemorySpace.SMEM),               # lambdas (2,)
        pl.BlockSpec((1, t_blk, D), lambda b, h, t: (b, t, h)),          # q, head h
        pl.BlockSpec((1, t_blk, D), lambda b, h, t: (b, t, H + h)),      # k, head h
        pl.BlockSpec((1, t_blk, D), lambda b, h, t: (b, t, 2 * H + h)),  # v, head h
    ]
    operands = [lambdas, qkv, qkv, qkv]
    if has_ve:
        in_specs.append(pl.BlockSpec((1, t_blk, D), lambda b, h, t: (b, t, h)))
        operands.append(ve)
    in_specs += [pl.BlockSpec((t_blk, D // 2), lambda b, h, t: (t, 0)),
                 pl.BlockSpec((t_blk, D // 2), lambda b, h, t: (t, 0))]
    operands += [cos, sin]

    out_shape = (jax.ShapeDtypeStruct((B, T, hdim), qkv.dtype),) * 3
    out_spec = pl.BlockSpec((1, t_blk, D), lambda b, h, t: (b, t, h))

    return pl.pallas_call(
        kern,
        out_shape=out_shape,
        grid=(B, H, nT),
        in_specs=in_specs,
        out_specs=(out_spec, out_spec, out_spec),
        compiler_params=pltpu.CompilerParams(
            dimension_semantics=("parallel", "parallel", "parallel")),
    )(*operands)


# ------------------- causal flash attention (lower-triangle grid) -------------------

def _flash_attn_kernel(qi_tab, ki_tab, q_ref, k_ref, v_ref, o_ref,
                       m_scr, l_scr, acc_scr, *, scale, tq, tkv, mask_value):
    s_idx = pl.program_id(2)
    qi = qi_tab[s_idx]
    ki = ki_tab[s_idx]
    # last KV block this query block needs (tile sizes are static ints)
    k_last = ((qi + 1) * tq - 1) // tkv

    @pl.when(ki == 0)
    def _init():
        m_scr[...] = jnp.full(m_scr.shape, -jnp.inf, m_scr.dtype)
        l_scr[...] = jnp.zeros(l_scr.shape, l_scr.dtype)
        acc_scr[...] = jnp.zeros(acc_scr.shape, acc_scr.dtype)

    q = q_ref[0]
    k = k_ref[0]
    v = v_ref[0]

    # q @ k^T in NT form: contract last dims, no materialized transpose.
    s = jax.lax.dot_general(q, k, (((1,), (1,)), ((), ())),
                            preferred_element_type=jnp.float32) * scale

    # causal mask in global coordinates (only bites on straddling blocks;
    # correct for any tq/tkv combination).
    row = qi * tq + jax.lax.broadcasted_iota(jnp.int32, (tq, tkv), 0)
    col = ki * tkv + jax.lax.broadcasted_iota(jnp.int32, (tq, tkv), 1)
    s = jnp.where(col > row, mask_value, s)

    m_prev = m_scr[...]
    m_new = jnp.maximum(m_prev, jnp.max(s, axis=-1, keepdims=True))
    alpha = jnp.exp(m_prev - m_new)
    p = jnp.exp(s - m_new)
    l_scr[...] = alpha * l_scr[...] + jnp.sum(p, axis=-1, keepdims=True)
    acc_scr[...] = alpha * acc_scr[...] + jnp.dot(
        p.astype(v.dtype), v, preferred_element_type=jnp.float32)
    m_scr[...] = m_new

    @pl.when(ki == k_last)
    def _finalize():
        o_ref[0] = (acc_scr[...] / l_scr[...]).astype(o_ref.dtype)


def pallas_flash_attention(q_hat, k_hat, v_mix, num_heads, head_dim,
                           *, tq_target=256, tkv_target=512):
    """q_hat/k_hat/v_mix: (B, T, H*D) pre-normalized/roped/mixed -> (B, T, H*D)."""
    B, T, hdim = q_hat.shape
    H, D = num_heads, head_dim
    assert hdim == H * D
    tq = _pick_tile(T, tq_target)
    tkv = _pick_tile(T, tkv_target)
    nq = T // tq

    # Lower-triangle schedule: only causally relevant (qi, ki) pairs are issued.
    qi_list, ki_list = [], []
    for qi in range(nq):
        k_last = ((qi + 1) * tq - 1) // tkv
        for ki in range(k_last + 1):
            qi_list.append(qi)
            ki_list.append(ki)
    qi_tab = jnp.array(qi_list, dtype=jnp.int32)
    ki_tab = jnp.array(ki_list, dtype=jnp.int32)
    n_steps = len(qi_list)

    kern = functools.partial(_flash_attn_kernel, scale=float(D) ** -0.5,
                             tq=tq, tkv=tkv, mask_value=-1e30)

    def q_map(b, h, s, qi_t, ki_t):
        return (b, qi_t[s], h)

    def kv_map(b, h, s, qi_t, ki_t):
        return (b, ki_t[s], h)

    def o_map(b, h, s, qi_t, ki_t):
        return (b, qi_t[s], h)

    grid_spec = pltpu.PrefetchScalarGridSpec(
        num_scalar_prefetch=2,
        grid=(B, H, n_steps),
        in_specs=[pl.BlockSpec((1, tq, D), q_map),
                  pl.BlockSpec((1, tkv, D), kv_map),
                  pl.BlockSpec((1, tkv, D), kv_map)],
        out_specs=pl.BlockSpec((1, tq, D), o_map),
        scratch_shapes=[pltpu.VMEM((tq, 1), jnp.float32),   # running max
                        pltpu.VMEM((tq, 1), jnp.float32),   # running sum
                        pltpu.VMEM((tq, D), jnp.float32)])  # accumulator

    return pl.pallas_call(
        kern,
        out_shape=jax.ShapeDtypeStruct((B, T, hdim), q_hat.dtype),
        grid_spec=grid_spec,
        compiler_params=pltpu.CompilerParams(
            dimension_semantics=("parallel", "parallel", "arbitrary"),
            vmem_limit_bytes=32 << 20),
    )(qi_tab, ki_tab, q_hat, k_hat, v_mix)


# ------------------------- params / glue -------------------------

def make_rotary_tables(head_dim, max_seq_len):
    quarter = head_dim // 4
    angular_freq = (1.0 / 1024.0) ** jnp.linspace(0.0, 1.0, quarter, dtype=jnp.float32)
    angular_freq = jnp.concatenate([angular_freq, jnp.zeros(quarter, jnp.float32)])
    t = jnp.arange(max_seq_len, dtype=jnp.float32)
    theta = jnp.outer(t, angular_freq)                # (max_seq_len, head_dim//2)
    return jnp.cos(theta), jnp.sin(theta)


def init_params(key, dim, num_heads, head_dim):
    hdim = num_heads * head_dim
    k1, k2 = jax.random.split(key)
    bound = (3.0 ** 0.5) * 0.5 * dim ** -0.5
    qkv_w = jax.random.uniform(k1, (3, hdim, dim), jnp.float32, -bound, bound)
    lambdas = jnp.array([0.5, 0.5], jnp.float32)
    # NOTE: the PyTorch module zeroes c_proj.weight at init (training trick);
    # here we use CastedLinear.reset_parameters' uniform init so the numerical
    # check is non-trivial.  Forward-pass semantics are unchanged.
    cb = (3.0 ** 0.5) * 0.5 * hdim ** -0.5
    c_proj_w = jax.random.uniform(k2, (dim, hdim), jnp.float32, -cb, cb)
    return dict(qkv_w=qkv_w, lambdas=lambdas, c_proj_w=c_proj_w)


def prepare_params(params, head_dim, max_seq_len, dtype=jnp.float32):
    """One-time layout prep: pre-transposed weights + rope tables."""
    qkv_w = params["qkv_w"]
    _, hdim, dim = qkv_w.shape
    cos, sin = make_rotary_tables(head_dim, max_seq_len)       # (S, D//2) each
    return dict(
        qkv_wT=jnp.asarray(qkv_w.reshape(3 * hdim, dim).T, dtype),   # (dim, 3*hdim)
        c_proj_wT=jnp.asarray(params["c_proj_w"].T, dtype),          # (hdim, dim)
        lambdas=jnp.asarray(params["lambdas"], jnp.float32),
        rope_cos=cos,   # f32; consumed once per token in the prep pass only
        rope_sin=sin,
    )


def causal_self_attention(prepped, x, ve, num_heads, head_dim):
    B, T, dim = x.shape
    H, D = num_heads, head_dim
    hdim = H * D
    assert T <= prepped["rope_cos"].shape[0], "Sequence length exceeds RoPE limit"

    # qkv projection (tiled Pallas matmul, pre-transposed weight)
    qkv = pallas_matmul(x.reshape(B * T, dim), prepped["qkv_wT"])     # (B*T, 3*hdim)
    qkv = qkv.reshape(B, T, 3 * hdim)

    ve3 = None if ve is None else ve.reshape(B, T, hdim).astype(x.dtype)

    # once-per-token prep: rms_norm + rotary (q, k) and lambda value mix
    q_hat, k_hat, v_mix = pallas_qkv_prep(
        qkv, ve3, prepped["lambdas"],
        prepped["rope_cos"][:T], prepped["rope_sin"][:T], H, D)

    # causal flash attention over the lower-triangle step schedule
    y = pallas_flash_attention(q_hat, k_hat, v_mix, H, D)              # (B, T, hdim)

    # output projection (tiled Pallas matmul, pre-transposed weight)
    out = pallas_matmul(y.reshape(B * T, hdim), prepped["c_proj_wT"])
    return out.reshape(B, T, dim)


# ------------------------- pure-JAX reference -------------------------

def reference(params, x, ve, num_heads, head_dim, max_seq_len):
    HI = jax.lax.Precision.HIGHEST
    B, T, dim = x.shape
    H, D = num_heads, head_dim
    hdim = H * D
    w = params["qkv_w"].reshape(3 * hdim, dim)
    qkv = jnp.dot(x.reshape(B * T, dim), w.T, precision=HI).reshape(B, T, 3 * H, D)
    q, k, v = qkv[:, :, :H], qkv[:, :, H:2 * H], qkv[:, :, 2 * H:]
    eps = jnp.finfo(jnp.float32).eps

    def rms(a):
        return a * jax.lax.rsqrt(jnp.mean(a * a, -1, keepdims=True) + eps)

    q, k = rms(q), rms(k)
    cos, sin = make_rotary_tables(D, max_seq_len)
    cos = cos[:T][None, :, None, :]
    sin = sin[:T][None, :, None, :]

    def rope(a):
        a1, a2 = a[..., :D // 2], a[..., D // 2:]
        return jnp.concatenate([a1 * cos + a2 * sin, -a1 * sin + a2 * cos], -1)

    q, k = rope(q), rope(k)
    lam = params["lambdas"]
    v = lam[0] * v + lam[1] * ve.reshape(B, T, H, D) if ve is not None else lam[0] * v
    q, k, v = [a.transpose(0, 2, 1, 3) for a in (q, k, v)]
    s = jnp.einsum("bhqd,bhkd->bhqk", q, k, precision=HI) * D ** -0.5
    mask = jnp.triu(jnp.ones((T, T), bool), 1)
    s = jnp.where(mask[None, None], -1e9, s)
    p = jax.nn.softmax(s, -1)
    y = jnp.einsum("bhqk,bhkd->bhqd", p, v, precision=HI)
    y = y.transpose(0, 2, 1, 3).reshape(B * T, hdim)
    return jnp.dot(y, params["c_proj_w"].T, precision=HI).reshape(B, T, dim)


if __name__ == "__main__":
    B, T, dim = 2, 16, 32
    num_heads, head_dim, max_seq_len = 2, 128, 32

    key = jax.random.PRNGKey(0)
    kp, kx, kv = jax.random.split(key, 3)
    params = init_params(kp, dim, num_heads, head_dim)
    x = jax.random.normal(kx, (B, T, dim), jnp.float32)
    ve = jax.random.normal(kv, (B, T, num_heads * head_dim), jnp.float32)

    # ---- f32 path: check against the pure-JAX reference ----
    prepped_f32 = prepare_params(params, head_dim, max_seq_len, dtype=jnp.float32)
    out = causal_self_attention(prepped_f32, x, ve, num_heads, head_dim)
    out = jax.block_until_ready(out)
    assert out.shape == (B, T, dim)

    ref = reference(params, x, ve, num_heads, head_dim, max_seq_len)
    err = float(jnp.max(jnp.abs(out - ref)))
    assert err < 2e-2, f"f32 path max abs error vs reference: {err}"

    # ---- bf16 path: MXU-native inputs, f32 softmax state / accumulation ----
    prepped_bf16 = prepare_params(params, head_dim, max_seq_len, dtype=jnp.bfloat16)
    out_bf16 = causal_self_attention(prepped_bf16, x.astype(jnp.bfloat16),
                                     ve.astype(jnp.bfloat16), num_heads, head_dim)
    out_bf16 = jax.block_until_ready(out_bf16)
    err_bf16 = float(jnp.max(jnp.abs(out_bf16.astype(jnp.float32) - ref)))
    assert err_bf16 < 1.5e-1, f"bf16 path max abs error vs reference: {err_bf16}"

    print("KERNEL_OK")
</pallas_src>

<mosaic_0001>
module attributes {stable_mosaic.version = 11 : i64} {
  func.func @_matmul_kernel(%arg0: i32, %arg1: i32, %arg2: i32, %arg3: memref<32x32xf32, #tpu.memory_space<vmem>>, %arg4: memref<32x384xf32, #tpu.memory_space<vmem>>, %arg5: memref<32x384xf32, #tpu.memory_space<vmem>>, %arg6: memref<32x384xf32, #tpu.memory_space<vmem>>) attributes {dimension_semantics = [#tpu.dimension_semantics<parallel>, #tpu.dimension_semantics<parallel>, #tpu.dimension_semantics<arbitrary>], iteration_bounds = array<i64: 1, 2, 1>, scalar_prefetch = 0 : i64, scratch_operands = 1 : i64, tpu.core_type = #tpu.core_type<tc>, window_params = [{transform_indices = @transform_0, window_bounds = array<i64: 32, 32>}, {transform_indices = @transform_1, window_bounds = array<i64: 32, 384>}, {transform_indices = @transform_2, window_bounds = array<i64: 32, 384>}]} {
    %c0_i32 = arith.constant 0 : i32
    %0 = arith.cmpi eq, %arg2, %c0_i32 : i32
    %1 = arith.extui %0 : i1 to i32
    %c0_i32_0 = arith.constant 0 : i32
    %2 = arith.cmpi ne, %1, %c0_i32_0 : i32
    scf.if %2 {
      %cst_10 = arith.constant 0.000000e+00 : f32
      %12 = vector.broadcast %cst_10 : f32 to vector<32x384xf32>
      %c0_11 = arith.constant 0 : index
      %c0_12 = arith.constant 0 : index
      %13 = vector.load %arg6[%c0_11, %c0_12] : memref<32x384xf32, #tpu.memory_space<vmem>>, vector<32x384xf32>
      tpu.vector_store %arg6[%c0_11, %c0_12], %12 {strides = array<i32>} : memref<32x384xf32, #tpu.memory_space<vmem>>, vector<32x384xf32>,
    } else {
    }
    %c0 = arith.constant 0 : index
    %c0_1 = arith.constant 0 : index
    %3 = vector.load %arg6[%c0, %c0_1] : memref<32x384xf32, #tpu.memory_space<vmem>>, vector<32x384xf32>
    %c0_2 = arith.constant 0 : index
    %c0_3 = arith.constant 0 : index
    %4 = vector.load %arg3[%c0_2, %c0_3] : memref<32x32xf32, #tpu.memory_space<vmem>>, vector<32x32xf32>
    %c0_4 = arith.constant 0 : index
    %c0_5 = arith.constant 0 : index
    %5 = vector.load %arg4[%c0_4, %c0_5] : memref<32x384xf32, #tpu.memory_space<vmem>>, vector<32x384xf32>
    %cst = arith.constant dense<0.000000e+00> : vector<32x384xf32>
    %6 = tpu.matmul %4, %5, %cst {dimension_numbers = #tpu.dot_dimension_numbers<[1], [0], [0], [1], [0, 0, 1, 1], [], []>} : vector<32x32xf32>, vector<32x384xf32>, vector<32x384xf32> -> vector<32x384xf32>
    %7 = arith.addf %3, %6 : vector<32x384xf32>
    %c0_6 = arith.constant 0 : index
    %c0_7 = arith.constant 0 : index
    %8 = vector.load %arg6[%c0_6, %c0_7] : memref<32x384xf32, #tpu.memory_space<vmem>>, vector<32x384xf32>
    tpu.vector_store %arg6[%c0_6, %c0_7], %7 {strides = array<i32>} : memref<32x384xf32, #tpu.memory_space<vmem>>, vector<32x384xf32>,
    %c0_i32_8 = arith.constant 0 : i32
    %9 = arith.cmpi eq, %arg2, %c0_i32_8 : i32
    %10 = arith.extui %9 : i1 to i32
    %c0_i32_9 = arith.constant 0 : i32
    %11 = arith.cmpi ne, %10, %c0_i32_9 : i32
    scf.if %11 {
      %c0_10 = arith.constant 0 : index
      %c0_11 = arith.constant 0 : index
      %12 = vector.load %arg6[%c0_10, %c0_11] : memref<32x384xf32, #tpu.memory_space<vmem>>, vector<32x384xf32>
      %c0_12 = arith.constant 0 : index
      %c0_13 = arith.constant 0 : index
      %13 = vector.load %arg5[%c0_12, %c0_13] : memref<32x384xf32, #tpu.memory_space<vmem>>, vector<32x384xf32>
      tpu.vector_store %arg5[%c0_12, %c0_13], %12 {strides = array<i32>} : memref<32x384xf32, #tpu.memory_space<vmem>>, vector<32x384xf32>,
    } else {
    }
    return
  }
  func.func @transform_0(%arg0: i32, %arg1: i32, %arg2: i32) -> (i32, i32) {
    %c0_i32 = arith.constant 0 : i32
    return %arg0, %arg2 : i32, i32
  }
  func.func @transform_1(%arg0: i32, %arg1: i32, %arg2: i32) -> (i32, i32) {
    %c0_i32 = arith.constant 0 : i32
    return %arg2, %arg1 : i32, i32
  }
  func.func @transform_2(%arg0: i32, %arg1: i32, %arg2: i32) -> (i32, i32) {
    %c0_i32 = arith.constant 0 : i32
    return %arg0, %arg1 : i32, i32
  }
}

</mosaic_0001>

<llo_original>
// kernel: tpu_custom_call.1
$region0: #{tpu_custom_call.1}
  #allocation0 [shape = 'u32[]', space=smem, size = 0x4, offset = 0x4, fixed_abs, tag = 'smem constant byte address 0x4 - core index']
  #allocation1 [shape = 'u32[144,128]{1,0:T(1,128)}', space=vmem, size = 0x12000, scoped, tag = 'internal scratch']
  #allocation2 [shape = 'f32[32,384]{1,0:T(8,128)}', space=vmem, size = 0xc000, scoped, tag = 'scratch operand']
  %s0 = inlined_call_operand.hbm [shape: f32[32,32], index: 0, kind: input, shape index: {}]
  %s1 = inlined_call_operand.hbm [shape: f32[32,768], index: 1, kind: input, shape index: {}]
  %s2 = inlined_call_operand.hbm [shape: f32[32,768], index: 2, kind: output, shape index: {}]
  %s3 = sld [smem:[#allocation0]]
  $region57: #{tpu_custom_call.1} parent=0
    _
  %s5 = ssub.s32 1, %s3
  %s6 = scalar_select 0, %s5, %s3
  $region1: #{tpu_custom_call.1} parent=0
    #allocation3 [shape = 'u8[16384]{0}', space=vmem, size = 0x4000, scoped, tag = 'input window, operand 0, single buffered']
    #allocation4 [shape = 's32[2]{0}', space=sflag, size = 0x8, scoped, tag = 'scoped memory for tpu_custom_call.1']
    #allocation5 [shape = 's32[2]{0}', space=sflag, size = 0x8, scoped, tag = 'scoped memory for tpu_custom_call.1']
    #allocation6 [shape = 'u8[98304]{0}', space=vmem, size = 0x18000, scoped, tag = 'input window, operand 1']
    #allocation7 [shape = 's32[2]{0}', space=sflag, size = 0x8, scoped, tag = 'scoped memory for tpu_custom_call.1']
    #allocation8 [shape = 'u8[98304]{0}', space=vmem, size = 0x18000, scoped, tag = 'output window, operand 0']
    %7 = vsyncpa [#allocation4], 0
    %8 = vsyncpa [#allocation7], 0
    %s9 = scalar_lea.sflag [#allocation7], 1
    %10 = vsyncpa %s9, 0
    %11 = vsyncpa [#allocation5], 0
    %s12 = scalar_lea.sflag [#allocation5], 1
    %13 = vsyncpa %s12, 0
    loop: start=0, step=1, limit=4
    $region2: #{tpu_custom_call.1} parent=1 // loop_pre_header
      _
    $region3: #{tpu_custom_call.1} parent=1 // loop_header
      %s15 = sphi 0, %s19
      %p16 = scmp.ge.s32.totalorder %s15, 4
      %s22 = sphi 0, %s41
      %s23 = sphi 0, %s37
      %s24 = sphi 0, %s33
      %s25 = sphi 0, %s22
      %s26 = sphi 0, %s23
      %s27 = sphi 0, %s24
      %s28 = sphi 0, %s25
      %s29 = sphi 0, %s26
      %s30 = sphi 0, %s27
      %s46 = sphi 0, %s48
      %s49 = sphi 0, %s46
      %s50 = sphi 0, %s49
      %s66 = sphi 0, %s50
      %s74 = sphi 0, %s76
      %s77 = sphi 0, %s74
      %s78 = sphi 0, %s77
      %s94 = sphi 0, %s78
      %s102 = sphi 0, %s104
      %s105 = sphi 0, %s102
      %s106 = sphi 0, %s105
      %s122 = sphi 0, %s106
    $region4: #{tpu_custom_call.1} parent=1 // loop_header_branch
      %18 = sbr.rel (%p16) target = $region8
    $region5: #{tpu_custom_call.1} parent=1 // loop_body
      %s20 = ssub.s32 %s15, 1
      %s21 = ssub.s32 %s15, 2
      %s31 = sadd.s32 1, %s24
      %p32 = scmp.ge.s32.totalorder %s31, 1
      %s33 = scalar_select %p32, 0, %s31
      %s34 = sadd.s32 1, %s23
      %s35 = scalar_select %p32, %s34, %s23
      %p36 = scmp.ge.s32.totalorder %s35, 2
      %s37 = scalar_select %p36, 0, %s35
      %s38 = sadd.s32 1, %s22
      %s39 = scalar_select %p36, %s38, %s22
      %p40 = scmp.ge.s32.totalorder %s39, 1
      %s41 = scalar_select %p40, 0, %s39
      %s42 = ssub.s32 %s22, %s41
      %s43 = ssub.s32 %s24, %s33
      %s44 = sor.u32 %s42, %s43
      %p45 = scmp.eq.s32.totalorder %s44, 0
      %s47 = sadd.s32 %s46, 1
      %s48 = scalar_select %p45, %s46, %s47
      %p51 = pneg %p45
      %p52 = scmp.eq.s32.totalorder %s15, 1
      %p53 = por %p51, %p52
      %p54 = scmp.ne.s32.totalorder %s46, %s49
      %p55 = scmp.eq.s32.totalorder %s15, 0
      %p56 = por %p54, %p55
      %p57 = scmp.ne.s32.totalorder %s46, %s49
      %p58 = scmp.eq.s32.totalorder %s20, 1
      %p59 = por %p57, %p58
      %p60 = scmp.ne.s32.totalorder %s49, %s50
      %p61 = scmp.eq.s32.totalorder %s20, 0
      %p62 = por %p60, %p61
      %p63 = scmp.ne.s32.totalorder %s49, %s50
      %p64 = scmp.eq.s32.totalorder %s21, 1
      %p65 = por %p63, %p64
      %p67 = scmp.ne.s32.totalorder %s50, %s66
      %p68 = scmp.eq.s32.totalorder %s21, 0
      %p69 = por %p67, %p68
      %s70 = ssub.s32 %s24, %s33
      %s71 = ssub.s32 %s23, %s37
      %s72 = sor.u32 %s70, %s71
      %p73 = scmp.eq.s32.totalorder %s72, 0
      %s75 = sadd.s32 %s74, 1
      %s76 = scalar_select %p73, %s74, %s75
      %p79 = pneg %p73
      %p80 = scmp.eq.s32.totalorder %s15, 1
      %p81 = por %p79, %p80
      %p82 = scmp.ne.s32.totalorder %s74, %s77
      %p83 = scmp.eq.s32.totalorder %s15, 0
      %p84 = por %p82, %p83
      %p85 = scmp.ne.s32.totalorder %s74, %s77
      %p86 = scmp.eq.s32.totalorder %s20, 1
      %p87 = por %p85, %p86
      %p88 = scmp.ne.s32.totalorder %s77, %s78
      %p89 = scmp.eq.s32.totalorder %s20, 0
      %p90 = por %p88, %p89
      %p91 = scmp.ne.s32.totalorder %s77, %s78
      %p92 = scmp.eq.s32.totalorder %s21, 1
      %p93 = por %p91, %p92
      %p95 = scmp.ne.s32.totalorder %s78, %s94
      %p96 = scmp.eq.s32.totalorder %s21, 0
      %p97 = por %p95, %p96
      %s98 = ssub.s32 %s22, %s41
      %s99 = ssub.s32 %s23, %s37
      %s100 = sor.u32 %s98, %s99
      %p101 = scmp.eq.s32.totalorder %s100, 0
      %s103 = sadd.s32 %s102, 1
      %s104 = scalar_select %p101, %s102, %s103
      %p107 = pneg %p101
      %p108 = scmp.eq.s32.totalorder %s15, 1
      %p109 = por %p107, %p108
      %p110 = scmp.ne.s32.totalorder %s102, %s105
      %p111 = scmp.eq.s32.totalorder %s15, 0
      %p112 = por %p110, %p111
      %p113 = scmp.ne.s32.totalorder %s102, %s105
      %p114 = scmp.eq.s32.totalorder %s20, 1
      %p115 = por %p113, %p114
      %p116 = scmp.ne.s32.totalorder %s105, %s106
      %p117 = scmp.eq.s32.totalorder %s20, 0
      %p118 = por %p116, %p117
      %p119 = scmp.ne.s32.totalorder %s105, %s106
      %p120 = scmp.eq.s32.totalorder %s21, 1
      %p121 = por %p119, %p120
      %p123 = scmp.ne.s32.totalorder %s106, %s122
      %p124 = scmp.eq.s32.totalorder %s21, 0
      %p125 = por %p123, %p124
      %p126 = scmp.le.s32.totalorder 1, %s15
      %p127 = scmp.lt.s32.totalorder %s15, 3
      %p128 = pnand %p126, %p127
      %p129 = pneg %p128
      // Predicated region
      $region9: #{tpu_custom_call.1} parent=5 // pred_check
        _
      $region10: #{tpu_custom_call.1} parent=5 // pred_check_branch
        %131 = sbr.rel (%p128) target = $region12
      $region11: #{tpu_custom_call.1} parent=5 // pred_region
        %s132 = ssub.s32 %s15, 1
        // Predicated region
        $region13: #{tpu_custom_call.1} parent=11 // pred_check
          %p133 = pneg %p62
        $region14: #{tpu_custom_call.1} parent=11 // pred_check_branch
          %135 = sbr.rel (%p133) target = $region16
        $region15: #{tpu_custom_call.1} parent=11 // pred_region
          %s136 = smul.u32 4, %s25
          %s138 = ssub.s32 512, 512
          %139 = vsyncadd [#allocation4], %s138
          %s140 = sadd.s32 %s27, %s136
          %s141 = smul.addr %s140, 128
          %s142 = scalar_lea.hbm %s0, %s141
          %s143 = sshll.u32 [#allocation3], 4
          %s144 = int_to_ptr.vmem [resolvable:$true] %s143
          %149 = dma.hbm_to_vmem [thread:$0]  %s142, 512, %s144, [#allocation4], 128, 128, 8
        $region16: #{tpu_custom_call.1} parent=11 // pred_fallthru
          _
      $region12: #{tpu_custom_call.1} parent=5 // pred_fallthru
        _
      %p150 = scmp.lt.s32.totalorder %s15, 2
      // Predicated region
      $region17: #{tpu_custom_call.1} parent=5 // pred_check
        %p151 = pneg %p150
      $region18: #{tpu_custom_call.1} parent=5 // pred_check_branch
        %153 = sbr.rel (%p151) target = $region20
      $region19: #{tpu_custom_call.1} parent=5 // pred_region
        // Predicated region
        $region21: #{tpu_custom_call.1} parent=19 // pred_check
          %p154 = pneg %p84
        $region22: #{tpu_custom_call.1} parent=19 // pred_check_branch
          %156 = sbr.rel (%p154) target = $region24
        $region23: #{tpu_custom_call.1} parent=19 // pred_region
          %s157 = sand.u32 %s74, 1
          %s158 = scalar_lea.sflag [#allocation7], %s157
          %s159 = sand.u32 %s74, 1
          %s160 = smul.addr %s159, 96
          %s161 = scalar_lea.vmem [#allocation6], %s160
          %s162 = smul.u32 4, %s24
          %s163 = smul.u32 3, %s23
          %s165 = ssub.s32 1536, 1536
          %166 = vsyncadd %s158, %s165
          %s167 = smul.addr %s162, 6
          %s168 = sadd.s32 %s163, %s167
          %s169 = smul.addr %s168, 128
          %s170 = scalar_lea.hbm %s1, %s169
          %s171 = sshll.u32 %s161, 4
          %s172 = int_to_ptr.vmem [resolvable:$true] %s171
          %177 = dma.hbm_to_vmem [thread:$0]  %s170, 1536, %s172, %s158, 768, 384, 24
        $region24: #{tpu_custom_call.1} parent=19 // pred_fallthru
          _
      $region20: #{tpu_custom_call.1} parent=5 // pred_fallthru
        _
      %p178 = scmp.le.s32.totalorder 1, %s15
      %p179 = scmp.lt.s32.totalorder %s15, 3
      %p180 = pnand %p178, %p179
      %p181 = pneg %p180
      // Predicated region
      $region25: #{tpu_custom_call.1} parent=5 // pred_check
        _
      $region26: #{tpu_custom_call.1} parent=5 // pred_check_branch
        %183 = sbr.rel (%p180) target = $region28
      $region27: #{tpu_custom_call.1} parent=5 // pred_region
        %s184 = ssub.s32 %s15, 1
        // Predicated region
        $region29: #{tpu_custom_call.1} parent=27 // pred_check
          %p185 = pneg %p62
        $region30: #{tpu_custom_call.1} parent=27 // pred_check_branch
          %187 = sbr.rel (%p185) target = $region32
        $region31: #{tpu_custom_call.1} parent=27 // pred_region
          %188 = dma.done [#allocation4], 512
        $region32: #{tpu_custom_call.1} parent=27 // pred_fallthru
          _
        %s189 = sand.u32 %s77, 1
        %s190 = scalar_lea.sflag [#allocation7], %s189
        %s191 = sand.u32 %s77, 1
        %s192 = smul.addr %s191, 96
        %s193 = scalar_lea.vmem [#allocation6], %s192
        // Predicated region
        $region33: #{tpu_custom_call.1} parent=27 // pred_check
          %p194 = pneg %p90
        $region34: #{tpu_custom_call.1} parent=27 // pred_check_branch
          %196 = sbr.rel (%p194) target = $region36
        $region35: #{tpu_custom_call.1} parent=27 // pred_region
          %197 = dma.done %s190, 1536
        $region36: #{tpu_custom_call.1} parent=27 // pred_fallthru
          _
        %p198 = pneg %p62
        %p199 = pneg %p59
        %s200 = sand.u32 %s77, 1
        %s201 = scalar_lea.sflag [#allocation7], %s200
        %s202 = sand.u32 %s77, 1
        %s203 = smul.addr %s202, 96
        %s204 = scalar_lea.vmem [#allocation6], %s203
        %p205 = pneg %p90
        %p206 = pneg %p87
        %p207 = pneg %p118
        %p208 = pneg %p115
        %s209 = sand.u32 %s105, 1
        %s210 = scalar_lea.sflag [#allocation5], %s209
        %s211 = sand.u32 %s105, 1
        %s212 = smul.addr %s211, 96
        %s213 = scalar_lea.vmem [#allocation8], %s212
        %s214 = smul.u32 4, %s25
        %s215 = smul.u32 4, %s27
        %s216 = smul.u32 3, %s26
        %s217 = smul.u32 4, %s25
        %s218 = smul.u32 3, %s26
        %p219 = scmp.eq.s32.totalorder %s27, 0
        // Predicated region
        $region37: #{tpu_custom_call.1} parent=27 // pred_check
          %p220 = pneg %p219
        $region38: #{tpu_custom_call.1} parent=27 // pred_check_branch
          %222 = sbr.rel (%p220) target = $region40
        $region39: #{tpu_custom_call.1} parent=27 // pred_region
          %223 = vst [vmem:[#allocation2] sm:$0xff] 0.0
          %224 = vst [vmem:[#allocation2 + $0x8] sm:$0xff] 0.0
          %225 = vst [vmem:[#allocation2 + $0x10] sm:$0xff] 0.0
          %226 = vst [vmem:[#allocation2 + $0x18] sm:$0xff] 0.0
          %227 = vst [vmem:[#allocation2 + $0x20] sm:$0xff] 0.0
          %228 = vst [vmem:[#allocation2 + $0x28] sm:$0xff] 0.0
          %229 = vst [vmem:[#allocation2 + $0x30] sm:$0xff] 0.0
          %230 = vst [vmem:[#allocation2 + $0x38] sm:$0xff] 0.0
          %231 = vst [vmem:[#allocation2 + $0x40] sm:$0xff] 0.0
          %232 = vst [vmem:[#allocation2 + $0x48] sm:$0xff] 0.0
          %233 = vst [vmem:[#allocation2 + $0x50] sm:$0xff] 0.0
          %234 = vst [vmem:[#allocation2 + $0x58] sm:$0xff] 0.0
        $region40: #{tpu_custom_call.1} parent=27 // pred_fallthru
          _
        %v235 = vld [vmem:[#allocation2] sm:$0xff]
        %v236 = vld [vmem:[#allocation2 + $0x8] sm:$0xff]
        %v237 = vld [vmem:[#allocation2 + $0x10] sm:$0xff]
        %v238 = vld [vmem:[#allocation2 + $0x18] sm:$0xff]
        %v239 = vld [vmem:[#allocation2 + $0x20] sm:$0xff]
        %v240 = vld [vmem:[#allocation2 + $0x28] sm:$0xff]
        %v241 = vld [vmem:[#allocation2 + $0x30] sm:$0xff]
        %v242 = vld [vmem:[#allocation2 + $0x38] sm:$0xff]
        %v243 = vld [vmem:[#allocation2 + $0x40] sm:$0xff]
        %v244 = vld [vmem:[#allocation2 + $0x48] sm:$0xff]
        %v245 = vld [vmem:[#allocation2 + $0x50] sm:$0xff]
        %v246 = vld [vmem:[#allocation2 + $0x58] sm:$0xff]
        %v247 = vld [vmem:[#allocation3] sm:$0xff]
        %v248 = vld [vmem:[#allocation3 + $0x8] sm:$0xff]
        %v249 = vld [vmem:[#allocation3 + $0x10] sm:$0xff]
        %v250 = vld [vmem:[#allocation3 + $0x18] sm:$0xff]
        %v251 = vld [vmem:[%s193] sm:$0xff]
        %v252 = vld [vmem:[%s193 + $0x8] sm:$0xff]
        %v253 = vld [vmem:[%s193 + $0x10] sm:$0xff]
        %v254 = vld [vmem:[%s193 + $0x18] sm:$0xff]
        %v255 = vld [vmem:[%s193 + $0x20] sm:$0xff]
        %v256 = vld [vmem:[%s193 + $0x28] sm:$0xff]
        %v257 = vld [vmem:[%s193 + $0x30] sm:$0xff]
        %v258 = vld [vmem:[%s193 + $0x38] sm:$0xff]
        %v259 = vld [vmem:[%s193 + $0x40] sm:$0xff]
        %v260 = vld [vmem:[%s193 + $0x48] sm:$0xff]
        %v261 = vld [vmem:[%s193 + $0x50] sm:$0xff]
        %v262 = vld [vmem:[%s193 + $0x58] sm:$0xff]
        %vm263 = vcmask 261120
        %v265 = vsel %vm263, %v247, 0
        %v268 = vsel %vm263, %v248, 0
        %v271 = vsel %vm263, %v249, 0
        %v274 = vsel %vm263, %v250, 0
        %276 = vmatprep.subr.mxu0 %v252
        %277 = vmatpush1.msra.mxu0 %v251
        %278 = vmatprep.subr.mxu0 %v255
        %279 = vmatpush1.msra.mxu0 %v254
        %280 = vmatprep.subr.mxu0 %v258
        %281 = vmatpush1.msra.mxu0 %v257
        %282 = vmatprep.subr.mxu0 %v261
        %283 = vmatpush1.msra.mxu0 %v260
        %284 = vmatprep.subr.mxu0 0.0
        %285 = vmatpush1.msra.mxu0 0.0
        %286 = vmatprep.subr.mxu0 0.0
        %287 = vmatpush1.msra.mxu0 0.0
        %288 = vmatprep.subr.mxu0 0.0
        %289 = vmatpush1.msra.mxu0 0.0
        %290 = vmatprep.subr.mxu0 0.0
        %291 = vmatpush1.msra.mxu0 0.0
        %292 = vmatprep.subr.mxu0 0.0
        %293 = vmatpush1.msra.mxu0 0.0
        %294 = vmatprep.subr.mxu0 0.0
        %295 = vmatpush1.msra.mxu0 0.0
        %296 = vmatprep.subr.mxu0 0.0
        %297 = vmatpush1.msra.mxu0 0.0
        %298 = vmatprep.subr.mxu0 0.0
        %299 = vmatpush1.msra.mxu0 0.0
        %300 = vmatprep.subr.mxu0 0.0
        %301 = vmatpush1.msra.mxu0 0.0
        %302 = vmatprep.subr.mxu0 0.0
        %303 = vmatpush1.msra.mxu0 0.0
        %304 = vmatprep.subr.mxu0 0.0
        %305 = vmatpush1.msra.mxu0 0.0
        %306 = vmatprep.subr.mxu0 0.0
        %307 = vmatpush1.msra.mxu0 0.0
        %308 = vmatprep.subr.mxu0 0.0
        %309 = vmatpush1.msra.mxu0 0.0
        %310 = vmatprep.subr.mxu0 0.0
        %311 = vmatpush1.msra.mxu0 0.0
        %312 = vmatprep.subr.mxu0 0.0
        %313 = vmatpush1.msra.mxu0 0.0
        %314 = vmatprep.subr.mxu0 0.0
        %315 = vmatpush1.msra.mxu0 0.0
        %316 = vmatprep.subr.mxu0 0.0
        %317 = vmatpush1.msra.mxu0 0.0
        %318 = vmatprep.subr.mxu0 0.0
        %319 = vmatpush1.msra.mxu0 0.0
        %320 = vmatprep.subr.mxu0 0.0
        %321 = vmatpush1.msra.mxu0 0.0
        %322 = vmatprep.subr.mxu0 0.0
        %323 = vmatpush1.msra.mxu0 0.0
        %324 = vmatprep.subr.mxu0 0.0
        %325 = vmatpush1.msra.mxu0 0.0
        %326 = vmatprep.subr.mxu0 0.0
        %327 = vmatpush1.msra.mxu0 0.0
        %328 = vmatprep.subr.mxu0 0.0
        %329 = vmatpush1.msra.mxu0 0.0
        %330 = vmatprep.subr.mxu0 0.0
        %331 = vmatpush1.msra.mxu0 0.0
        %332 = vmatprep.subr.mxu0 0.0
        %333 = vmatpush1.msra.mxu0 0.0
        %334 = vmatprep.subr.mxu0 0.0
        %335 = vmatpush1.msra.mxu0 0.0
        %336 = vmatprep.subr.mxu0 0.0
        %337 = vmatpush1.msra.mxu0 0.0
        %338 = vmatprep.subr.mxu0 0.0
        %339 = vmatpush1.msra.mxu0 0.0
        %340 = vmatprep.mubr.f32.mxu0 0.0
        %341 = vmatmul.mubr.f32.gmra.mrb[0].mxu0 %v265
        %v342 = vpop.f32.mrb[0].mxu0
        %v343 = vadd.f32 0.0, %v342
        %v344 = vpop.f32.mrb[0].mxu0
        %v345 = vadd.f32 0.0, %v344
        %346 = vmatprep.mubr.f32.mxu0 0.0
        %347 = vmatmul.mubr.f32.gmra.mrb[0].mxu0 %v268
        %v348 = vpop.f32.mrb[0].mxu0
        %v349 = vadd.f32 0.0, %v348
        %v350 = vpop.f32.mrb[0].mxu0
        %v351 = vadd.f32 0.0, %v350
        %352 = vmatprep.mubr.f32.mxu0 0.0
        %353 = vmatmul.mubr.f32.gmra.mrb[0].mxu0 %v271
        %v354 = vpop.f32.mrb[0].mxu0
        %v355 = vadd.f32 0.0, %v354
        %v356 = vpop.f32.mrb[0].mxu0
        %v357 = vadd.f32 0.0, %v356
        %358 = vmatprep.mubr.f32.mxu0 0.0
        %359 = vmatmul.mubr.f32.gmra.mrb[0].mxu0 %v274
        %v360 = vpop.f32.mrb[0].mxu0
        %v361 = vadd.f32 0.0, %v360
        %v362 = vpop.f32.mrb[0].mxu0
        %v363 = vadd.f32 0.0, %v362
        %364 = vdwg.mxu0
        %365 = vmatprep.subr.mxu0 0.0
        %366 = vmatpush1.msra.mxu0 %v253
        %367 = vmatprep.subr.mxu0 0.0
        %368 = vmatpush1.msra.mxu0 %v256
        %369 = vmatprep.subr.mxu0 0.0
        %370 = vmatpush1.msra.mxu0 %v259
        %371 = vmatprep.subr.mxu0 0.0
        %372 = vmatpush1.msra.mxu0 %v262
        %373 = vmatprep.subr.mxu0 0.0
        %374 = vmatpush1.msra.mxu0 0.0
        %375 = vmatprep.subr.mxu0 0.0
        %376 = vmatpush1.msra.mxu0 0.0
        %377 = vmatprep.subr.mxu0 0.0
        %378 = vmatpush1.msra.mxu0 0.0
        %379 = vmatprep.subr.mxu0 0.0
        %380 = vmatpush1.msra.mxu0 0.0
        %381 = vmatprep.subr.mxu0 0.0
        %382 = vmatpush1.msra.mxu0 0.0
        %383 = vmatprep.subr.mxu0 0.0
        %384 = vmatpush1.msra.mxu0 0.0
        %385 = vmatprep.subr.mxu0 0.0
        %386 = vmatpush1.msra.mxu0 0.0
        %387 = vmatprep.subr.mxu0 0.0
        %388 = vmatpush1.msra.mxu0 0.0
        %389 = vmatprep.subr.mxu0 0.0
        %390 = vmatpush1.msra.mxu0 0.0
        %391 = vmatprep.subr.mxu0 0.0
        %392 = vmatpush1.msra.mxu0 0.0
        %393 = vmatprep.subr.mxu0 0.0
        %394 = vmatpush1.msra.mxu0 0.0
        %395 = vmatprep.subr.mxu0 0.0
        %396 = vmatpush1.msra.mxu0 0.0
        %397 = vmatprep.subr.mxu0 0.0
        %398 = vmatpush1.msra.mxu0 0.0
        %399 = vmatprep.subr.mxu0 0.0
        %400 = vmatpush1.msra.mxu0 0.0
        %401 = vmatprep.subr.mxu0 0.0
        %402 = vmatpush1.msra.mxu0 0.0
        %403 = vmatprep.subr.mxu0 0.0
        %404 = vmatpush1.msra.mxu0 0.0
        %405 = vmatprep.subr.mxu0 0.0
        %406 = vmatpush1.msra.mxu0 0.0
        %407 = vmatprep.subr.mxu0 0.0
        %408 = vmatpush1.msra.mxu0 0.0
        %409 = vmatprep.subr.mxu0 0.0
        %410 = vmatpush1.msra.mxu0 0.0
        %411 = vmatprep.subr.mxu0 0.0
        %412 = vmatpush1.msra.mxu0 0.0
        %413 = vmatprep.subr.mxu0 0.0
        %414 = vmatpush1.msra.mxu0 0.0
        %415 = vmatprep.subr.mxu0 0.0
        %416 = vmatpush1.msra.mxu0 0.0
        %417 = vmatprep.subr.mxu0 0.0
        %418 = vmatpush1.msra.mxu0 0.0
        %419 = vmatprep.subr.mxu0 0.0
        %420 = vmatpush1.msra.mxu0 0.0
        %421 = vmatprep.subr.mxu0 0.0
        %422 = vmatpush1.msra.mxu0 0.0
        %423 = vmatprep.subr.mxu0 0.0
        %424 = vmatpush1.msra.mxu0 0.0
        %425 = vmatprep.subr.mxu0 0.0
        %426 = vmatpush1.msra.mxu0 0.0
        %427 = vmatprep.subr.mxu0 0.0
        %428 = vmatpush1.msra.mxu0 0.0
        %429 = vmatprep.mubr.f32.mxu0 0.0
        %430 = vmatmul.mubr.f32.gmra.mrb[0].mxu0 %v265
        %v431 = vpop.f32.mrb[0].mxu0
        %v432 = vadd.f32 0.0, %v431
        %v433 = vpop.f32.mrb[0].mxu0
        %434 = vmatprep.mubr.f32.mxu0 0.0
        %435 = vmatmul.mubr.f32.gmra.mrb[0].mxu0 %v268
        %v436 = vpop.f32.mrb[0].mxu0
        %v437 = vadd.f32 0.0, %v436
        %v438 = vpop.f32.mrb[0].mxu0
        %439 = vmatprep.mubr.f32.mxu0 0.0
        %440 = vmatmul.mubr.f32.gmra.mrb[0].mxu0 %v271
        %v441 = vpop.f32.mrb[0].mxu0
        %v442 = vadd.f32 0.0, %v441
        %v443 = vpop.f32.mrb[0].mxu0
        %444 = vmatprep.mubr.f32.mxu0 0.0
        %445 = vmatmul.mubr.f32.gmra.mrb[0].mxu0 %v274
        %v446 = vpop.f32.mrb[0].mxu0
        %v447 = vadd.f32 0.0, %v446
        %v448 = vpop.f32.mrb[0].mxu0
        %449 = vdwg.mxu0
        %v450 = vadd.f32 %v235, %v343
        %v451 = vadd.f32 %v236, %v345
        %v452 = vadd.f32 %v237, %v432
        %v453 = vadd.f32 %v238, %v349
        %v454 = vadd.f32 %v239, %v351
        %v455 = vadd.f32 %v240, %v437
        %v456 = vadd.f32 %v241, %v355
        %v457 = vadd.f32 %v242, %v357
        %v458 = vadd.f32 %v243, %v442
        %v459 = vadd.f32 %v244, %v361
        %v460 = vadd.f32 %v245, %v363
        %v461 = vadd.f32 %v246, %v447
        %462 = vst [vmem:[#allocation2] sm:$0xff] %v450
        %463 = vst [vmem:[#allocation2 + $0x8] sm:$0xff] %v451
        %464 = vst [vmem:[#allocation2 + $0x10] sm:$0xff] %v452
        %465 = vst [vmem:[#allocation2 + $0x18] sm:$0xff] %v453
        %466 = vst [vmem:[#allocation2 + $0x20] sm:$0xff] %v454
        %467 = vst [vmem:[#allocation2 + $0x28] sm:$0xff] %v455
        %468 = vst [vmem:[#allocation2 + $0x30] sm:$0xff] %v456
        %469 = vst [vmem:[#allocation2 + $0x38] sm:$0xff] %v457
        %470 = vst [vmem:[#allocation2 + $0x40] sm:$0xff] %v458
        %471 = vst [vmem:[#allocation2 + $0x48] sm:$0xff] %v459
        %472 = vst [vmem:[#allocation2 + $0x50] sm:$0xff] %v460
        %473 = vst [vmem:[#allocation2 + $0x58] sm:$0xff] %v461
        // Predicated region
        $region41: #{tpu_custom_call.1} parent=27 // pred_check
          %p474 = pneg %p219
        $region42: #{tpu_custom_call.1} parent=27 // pred_check_branch
          %476 = sbr.rel (%p474) target = $region44
        $region43: #{tpu_custom_call.1} parent=27 // pred_region
          %v477 = vld [vmem:[#allocation2] sm:$0xff]
          %v478 = vld [vmem:[#allocation2 + $0x8] sm:$0xff]
          %v479 = vld [vmem:[#allocation2 + $0x10] sm:$0xff]
          %v480 = vld [vmem:[#allocation2 + $0x18] sm:$0xff]
          %v481 = vld [vmem:[#allocation2 + $0x20] sm:$0xff]
          %v482 = vld [vmem:[#allocation2 + $0x28] sm:$0xff]
          %v483 = vld [vmem:[#allocation2 + $0x30] sm:$0xff]
          %v484 = vld [vmem:[#allocation2 + $0x38] sm:$0xff]
          %v485 = vld [vmem:[#allocation2 + $0x40] sm:$0xff]
          %v486 = vld [vmem:[#allocation2 + $0x48] sm:$0xff]
          %v487 = vld [vmem:[#allocation2 + $0x50] sm:$0xff]
          %v488 = vld [vmem:[#allocation2 + $0x58] sm:$0xff]
          %489 = vst [vmem:[%s213] sm:$0xff] %v477
          %490 = vst [vmem:[%s213 + $0x8] sm:$0xff] %v478
          %491 = vst [vmem:[%s213 + $0x10] sm:$0xff] %v479
          %492 = vst [vmem:[%s213 + $0x18] sm:$0xff] %v480
          %493 = vst [vmem:[%s213 + $0x20] sm:$0xff] %v481
          %494 = vst [vmem:[%s213 + $0x28] sm:$0xff] %v482
          %495 = vst [vmem:[%s213 + $0x30] sm:$0xff] %v483
          %496 = vst [vmem:[%s213 + $0x38] sm:$0xff] %v484
          %497 = vst [vmem:[%s213 + $0x40] sm:$0xff] %v485
          %498 = vst [vmem:[%s213 + $0x48] sm:$0xff] %v486
          %499 = vst [vmem:[%s213 + $0x50] sm:$0xff] %v487
          %500 = vst [vmem:[%s213 + $0x58] sm:$0xff] %v488
        $region44: #{tpu_custom_call.1} parent=27 // pred_fallthru
          _
        %s501 = sand.u32 %s105, 1
        %s502 = scalar_lea.sflag [#allocation5], %s501
        %s503 = sand.u32 %s105, 1
        %s504 = smul.addr %s503, 96
        %s505 = scalar_lea.vmem [#allocation8], %s504
        // Predicated region
        $region45: #{tpu_custom_call.1} parent=27 // pred_check
          %p506 = pneg %p115
        $region46: #{tpu_custom_call.1} parent=27 // pred_check_branch
          %508 = sbr.rel (%p506) target = $region48
        $region47: #{tpu_custom_call.1} parent=27 // pred_region
          %s509 = smul.u32 4, %s25
          %s510 = smul.u32 3, %s26
          %s512 = ssub.s32 1536, 1536
          %513 = vsyncadd %s502, %s512
          %s514 = smul.addr %s509, 6
          %s515 = sadd.s32 %s510, %s514
          %s516 = smul.addr %s515, 128
          %s517 = scalar_lea.hbm %s2, %s516
          %s518 = sshll.u32 %s505, 4
          %s519 = int_to_ptr.vmem [resolvable:$true] %s518
          %524 = dma.vmem_to_hbm [thread:$0]  %s519, 1536, %s517, %s502, 384, 768, 24
        $region48: #{tpu_custom_call.1} parent=27 // pred_fallthru
          _
      $region28: #{tpu_custom_call.1} parent=5 // pred_fallthru
        _
      %p525 = scmp.le.s32.totalorder 2, %s15
      // Predicated region
      $region49: #{tpu_custom_call.1} parent=5 // pred_check
        %p526 = pneg %p525
      $region50: #{tpu_custom_call.1} parent=5 // pred_check_branch
        %528 = sbr.rel (%p526) target = $region52
      $region51: #{tpu_custom_call.1} parent=5 // pred_region
        %s529 = ssub.s32 %s15, 2
        // Predicated region
        $region53: #{tpu_custom_call.1} parent=51 // pred_check
          %p530 = pneg %p121
        $region54: #{tpu_custom_call.1} parent=51 // pred_check_branch
          %532 = sbr.rel (%p530) target = $region56
        $region55: #{tpu_custom_call.1} parent=51 // pred_region
          %s533 = sand.u32 %s106, 1
          %s534 = scalar_lea.sflag [#allocation5], %s533
          %s535 = sand.u32 %s106, 1
          %s536 = smul.addr %s535, 96
          %s537 = scalar_lea.vmem [#allocation8], %s536
          %538 = dma.done %s534, 1536
        $region56: #{tpu_custom_call.1} parent=51 // pred_fallthru
          _
      $region52: #{tpu_custom_call.1} parent=5 // pred_fallthru
        _
    $region6: #{tpu_custom_call.1} parent=1 // loop_footer
      %s19 = sadd.s32 1, %s15
    $region7: #{tpu_custom_call.1} parent=1 // loop_footer_branch
      %14 = sbr.rel target = $region3
    $region8: #{tpu_custom_call.1} parent=1 // loop_exit
      _
    %539 = vsyncpa [#allocation4], 1
    %s540 = scalar_lea.sflag [#allocation4], 1
    %541 = vsyncpa %s540, 1
    %542 = vsyncpa [#allocation7], 1
    %s543 = scalar_lea.sflag [#allocation7], 1
    %544 = vsyncpa %s543, 1
    %545 = vsyncpa [#allocation5], 1
    %s546 = scalar_lea.sflag [#allocation5], 1
    %547 = vsyncpa %s546, 1

</llo_original>
